<compile_context>
chip_gen: v5e
topology: v5e:2x2
jax: 0.10.0
libtpu: 0.0.40
codegen_flags: <defaults>
</compile_context>

<pallas_src>
import functools

import jax
import jax.numpy as jnp
from jax.experimental import pallas as pl
from jax.experimental.pallas import tpu as pltpu

_LANES = 128
_SUBLANES = 8
_TILE_ELEMS = _SUBLANES * _LANES        # 1024 elements per (8,128) vreg tile
_MAX_CHUNK = 1024                       # (1024, 8, 128) f32 = 4 MiB per input tile


def _tensorcores_per_device():
    """2 for parts with two TensorCores behind one device (v4/v5p/v7x), else 1."""
    try:
        kind = jax.devices()[0].device_kind.lower()
    except Exception:
        return 1
    if ("v4" in kind) or ("v5p" in kind) or ("v7" in kind):
        return 2
    return 1


def _dice_kernel(x_ref, t_ref, inter_ref, denom_ref, *,
                 n8, chunk, tiles_per_split):
    s = pl.program_id(0)                # parallel split (2 only on multi-TC parts)
    t = pl.program_id(1)                # reduction steps within a split

    @pl.when(t == 0)
    def _init():
        inter_ref[...] = jnp.zeros_like(inter_ref)
        denom_ref[...] = jnp.zeros_like(denom_ref)

    # Logical block index (may overshoot n_blocks for the last split when
    # n_blocks is odd; the index_map clamps the DMA and compute is skipped).
    bi = s * tiles_per_split + t
    # Number of valid (8,128) slabs in this block.  n8 < 2^31 for any tensor
    # up to 2^41 elements, so int32 math is safe here.
    valid_rows = n8 - bi * chunk

    def _accumulate(x, tg):
        # Fold the (chunk, 8, 128) tile into per-(sublane, lane) partial sums:
        # only elementwise VPU adds per tile; the cross-lane reduce happens
        # once, outside, on the tiny per-split partials.
        inter_ref[...] += jnp.sum(x * tg, axis=0, keepdims=True)
        denom_ref[...] += jnp.sum(x + tg, axis=0, keepdims=True)

    @pl.when(valid_rows >= chunk)
    def _fast():                        # bulk of the work: no masking at all
        x = jax.nn.sigmoid(x_ref[...].astype(jnp.float32))
        tg = t_ref[...].astype(jnp.float32)
        _accumulate(x, tg)

    @pl.when(jnp.logical_and(valid_rows > 0, valid_rows < chunk))
    def _masked():                      # at most ONE partial block in total
        rows = jax.lax.broadcasted_iota(jnp.int32, (chunk, 1, 1), 0)
        valid = rows < valid_rows       # per-slab validity, broadcast over (8,128)
        x = jnp.where(valid, jax.nn.sigmoid(x_ref[...].astype(jnp.float32)), 0.0)
        tg = jnp.where(valid, t_ref[...].astype(jnp.float32), 0.0)
        _accumulate(x, tg)
    # valid_rows <= 0 (clamped duplicate block): compute skipped entirely.


def _run_prefix_kernel(x3d, t3d, n8):
    """Reduce the (n8, 8, 128) prefix to per-(sublane,lane) f32 partials."""
    chunk = min(_MAX_CHUNK, n8)
    n_blocks = pl.cdiv(n8, chunk)

    cores = _tensorcores_per_device()
    n_split = 2 if (cores >= 2 and n_blocks >= 2) else 1
    tiles_per_split = pl.cdiv(n_blocks, n_split)

    def in_map(s, t):
        # Clamp so an overshooting step of the last split re-reads a valid
        # block (its contribution is skipped inside the kernel).
        return (jnp.minimum(s * tiles_per_split + t, n_blocks - 1), 0, 0)

    def out_map(s, t):
        return (s, 0, 0)                # constant along t -> VMEM-resident acc

    kernel = functools.partial(_dice_kernel, n8=n8, chunk=chunk,
                               tiles_per_split=tiles_per_split)

    inter_p, denom_p = pl.pallas_call(
        kernel,
        out_shape=(
            jax.ShapeDtypeStruct((n_split, _SUBLANES, _LANES), jnp.float32),
            jax.ShapeDtypeStruct((n_split, _SUBLANES, _LANES), jnp.float32),
        ),
        grid_spec=pltpu.PrefetchScalarGridSpec(
            num_scalar_prefetch=0,
            grid=(n_split, tiles_per_split),
            in_specs=[
                pl.BlockSpec((chunk, _SUBLANES, _LANES), in_map),
                pl.BlockSpec((chunk, _SUBLANES, _LANES), in_map),
            ],
            out_specs=[
                pl.BlockSpec((1, _SUBLANES, _LANES), out_map),
                pl.BlockSpec((1, _SUBLANES, _LANES), out_map),
            ],
        ),
        compiler_params=pltpu.CompilerParams(
            dimension_semantics=("parallel", "arbitrary"),
            vmem_limit_bytes=32 * 1024 * 1024,
        ),
    )(x3d, t3d)
    return inter_p, denom_p


def dice_loss_binary(inputs, targets, smooth=1.0):
    """Pallas TPU implementation of DiceLoss_binary.forward."""
    total = inputs.size
    x_flat = inputs.reshape(-1)         # collapsing dims; see layout note above
    t_flat = targets.reshape(-1)

    n8 = total // _TILE_ELEMS           # full (8,128) slabs
    tail = total - n8 * _TILE_ELEMS     # < 1024 ragged elements

    inter = jnp.float32(0.0)
    denom = jnp.float32(0.0)            # == sum(sigmoid(x)) + sum(targets)

    if n8 > 0:
        if tail:
            x_main = x_flat[: n8 * _TILE_ELEMS]
            t_main = t_flat[: n8 * _TILE_ELEMS]
        else:
            x_main, t_main = x_flat, t_flat
        x3d = x_main.reshape(n8, _SUBLANES, _LANES)
        t3d = t_main.reshape(n8, _SUBLANES, _LANES)
        inter_p, denom_p = _run_prefix_kernel(x3d, t3d, n8)
        # Tiny final combine (<= 2 x 8 x 128 floats per output).
        inter = inter + jnp.sum(inter_p)
        denom = denom + jnp.sum(denom_p)

    if tail:
        # <1024 elements: negligible, reduced with plain jnp ops (no O(N) pad).
        x_t = jax.nn.sigmoid(x_flat[n8 * _TILE_ELEMS:].astype(jnp.float32))
        t_t = t_flat[n8 * _TILE_ELEMS:].astype(jnp.float32)
        inter = inter + jnp.sum(x_t * t_t)
        denom = denom + jnp.sum(x_t) + jnp.sum(t_t)

    smooth = jnp.float32(smooth)
    dice = (2.0 * inter + smooth) / (denom + smooth)
    return 1.0 - dice


def _reference(inputs, targets, smooth=1.0):
    x = jax.nn.sigmoid(inputs.astype(jnp.float32))
    t = targets.astype(jnp.float32)
    inter = jnp.sum(x * t)
    dice = (2.0 * inter + smooth) / (jnp.sum(x) + jnp.sum(t) + smooth)
    return 1.0 - dice


if __name__ == "__main__":
    key = jax.random.PRNGKey(0)
    k1, k2 = jax.random.split(key)

    # NCHW: batch=2, channels=4, spatial=16x16
    inputs = jax.random.normal(k1, (2, 4, 16, 16), dtype=jnp.float32)
    targets = (jax.random.uniform(k2, (2, 4, 16, 16)) > 0.5).astype(jnp.float32)

    loss = jax.block_until_ready(dice_loss_binary(inputs, targets, smooth=1.0))
    ref = jax.block_until_ready(_reference(inputs, targets, smooth=1.0))

    assert jnp.allclose(loss, ref, rtol=1e-5, atol=1e-5), (loss, ref)
    print("KERNEL_OK")
</pallas_src>

<mosaic_0001>
module attributes {stable_mosaic.version = 11 : i64} {
  func.func @_dice_kernel(%arg0: i32, %arg1: i32, %arg2: memref<2x8x128xf32, #tpu.memory_space<vmem>>, %arg3: memref<2x8x128xf32, #tpu.memory_space<vmem>>, %arg4: memref<1x8x128xf32, #tpu.memory_space<vmem>>, %arg5: memref<1x8x128xf32, #tpu.memory_space<vmem>>) attributes {dimension_semantics = [#tpu.dimension_semantics<parallel>, #tpu.dimension_semantics<arbitrary>], iteration_bounds = array<i64: 1, 1>, scalar_prefetch = 0 : i64, scratch_operands = 0 : i64, tpu.core_type = #tpu.core_type<tc>, window_params = [{transform_indices = @transform_0, window_bounds = array<i64: 2, 8, 128>}, {transform_indices = @transform_1, window_bounds = array<i64: 2, 8, 128>}, {transform_indices = @transform_2, window_bounds = array<i64: 1, 8, 128>}, {transform_indices = @transform_3, window_bounds = array<i64: 1, 8, 128>}]} {
    %c0_i32 = arith.constant 0 : i32
    %0 = arith.cmpi eq, %arg1, %c0_i32 : i32
    %1 = arith.extui %0 : i1 to i32
    %c0_i32_0 = arith.constant 0 : i32
    %2 = arith.cmpi ne, %1, %c0_i32_0 : i32
    scf.if %2 {
      %cst = arith.constant 0.000000e+00 : f32
      %15 = vector.broadcast %cst : f32 to vector<1x8x128xf32>
      %c0 = arith.constant 0 : index
      %c0_7 = arith.constant 0 : index
      %c0_8 = arith.constant 0 : index
      %16 = vector.load %arg4[%c0, %c0_7, %c0_8] : memref<1x8x128xf32, #tpu.memory_space<vmem>>, vector<1x8x128xf32>
      tpu.vector_store %arg4[%c0, %c0_7, %c0_8], %15 {strides = array<i32>} : memref<1x8x128xf32, #tpu.memory_space<vmem>>, vector<1x8x128xf32>,
      %cst_9 = arith.constant 0.000000e+00 : f32
      %17 = vector.broadcast %cst_9 : f32 to vector<1x8x128xf32>
      %c0_10 = arith.constant 0 : index
      %c0_11 = arith.constant 0 : index
      %c0_12 = arith.constant 0 : index
      %18 = vector.load %arg5[%c0_10, %c0_11, %c0_12] : memref<1x8x128xf32, #tpu.memory_space<vmem>>, vector<1x8x128xf32>
      tpu.vector_store %arg5[%c0_10, %c0_11, %c0_12], %17 {strides = array<i32>} : memref<1x8x128xf32, #tpu.memory_space<vmem>>, vector<1x8x128xf32>,
    } else {
    }
    %c1_i32 = arith.constant 1 : i32
    %3 = arith.muli %arg0, %c1_i32 : i32
    %4 = arith.addi %3, %arg1 : i32
    %c2_i32 = arith.constant 2 : i32
    %5 = arith.muli %4, %c2_i32 : i32
    %c2_i32_1 = arith.constant 2 : i32
    %6 = arith.subi %c2_i32_1, %5 : i32
    %c2_i32_2 = arith.constant 2 : i32
    %7 = arith.cmpi sge, %6, %c2_i32_2 : i32
    %8 = arith.extui %7 : i1 to i32
    %c0_i32_3 = arith.constant 0 : i32
    %9 = arith.cmpi ne, %8, %c0_i32_3 : i32
    scf.if %9 {
      %c0 = arith.constant 0 : index
      %c0_7 = arith.constant 0 : index
      %c0_8 = arith.constant 0 : index
      %15 = vector.load %arg2[%c0, %c0_7, %c0_8] : memref<2x8x128xf32, #tpu.memory_space<vmem>>, vector<2x8x128xf32>
      %16 = arith.negf %15 : vector<2x8x128xf32>
      %17 = math.exp %16 : vector<2x8x128xf32>
      %cst = arith.constant 1.000000e+00 : f32
      %18 = vector.broadcast %cst : f32 to vector<2x8x128xf32>
      %19 = arith.addf %18, %17 : vector<2x8x128xf32>
      %20 = arith.divf %18, %19 : vector<2x8x128xf32>
      %c0_9 = arith.constant 0 : index
      %c0_10 = arith.constant 0 : index
      %c0_11 = arith.constant 0 : index
      %21 = vector.load %arg3[%c0_9, %c0_10, %c0_11] : memref<2x8x128xf32, #tpu.memory_space<vmem>>, vector<2x8x128xf32>
      %c0_12 = arith.constant 0 : index
      %c0_13 = arith.constant 0 : index
      %c0_14 = arith.constant 0 : index
      %22 = vector.load %arg4[%c0_12, %c0_13, %c0_14] : memref<1x8x128xf32, #tpu.memory_space<vmem>>, vector<1x8x128xf32>
      %23 = arith.mulf %20, %21 : vector<2x8x128xf32>
      %cst_15 = arith.constant dense<0.000000e+00> : vector<8x128xf32>
      %24 = vector.multi_reduction <add>, %23, %cst_15 [0] : vector<2x8x128xf32> to vector<8x128xf32>
      %25 = vector.shape_cast %24 : vector<8x128xf32> to vector<1x8x128xf32>
      %26 = arith.addf %22, %25 : vector<1x8x128xf32>
      %c0_16 = arith.constant 0 : index
      %c0_17 = arith.constant 0 : index
      %c0_18 = arith.constant 0 : index
      %27 = vector.load %arg4[%c0_16, %c0_17, %c0_18] : memref<1x8x128xf32, #tpu.memory_space<vmem>>, vector<1x8x128xf32>
      tpu.vector_store %arg4[%c0_16, %c0_17, %c0_18], %26 {strides = array<i32>} : memref<1x8x128xf32, #tpu.memory_space<vmem>>, vector<1x8x128xf32>,
      %c0_19 = arith.constant 0 : index
      %c0_20 = arith.constant 0 : index
      %c0_21 = arith.constant 0 : index
      %28 = vector.load %arg5[%c0_19, %c0_20, %c0_21] : memref<1x8x128xf32, #tpu.memory_space<vmem>>, vector<1x8x128xf32>
      %29 = arith.addf %20, %21 : vector<2x8x128xf32>
      %cst_22 = arith.constant dense<0.000000e+00> : vector<8x128xf32>
      %30 = vector.multi_reduction <add>, %29, %cst_22 [0] : vector<2x8x128xf32> to vector<8x128xf32>
      %31 = vector.shape_cast %30 : vector<8x128xf32> to vector<1x8x128xf32>
      %32 = arith.addf %28, %31 : vector<1x8x128xf32>
      %c0_23 = arith.constant 0 : index
      %c0_24 = arith.constant 0 : index
      %c0_25 = arith.constant 0 : index
      %33 = vector.load %arg5[%c0_23, %c0_24, %c0_25] : memref<1x8x128xf32, #tpu.memory_space<vmem>>, vector<1x8x128xf32>
      tpu.vector_store %arg5[%c0_23, %c0_24, %c0_25], %32 {strides = array<i32>} : memref<1x8x128xf32, #tpu.memory_space<vmem>>, vector<1x8x128xf32>,
    } else {
    }
    %c0_i32_4 = arith.constant 0 : i32
    %10 = arith.cmpi sgt, %6, %c0_i32_4 : i32
    %c2_i32_5 = arith.constant 2 : i32
    %11 = arith.cmpi slt, %6, %c2_i32_5 : i32
    %12 = arith.andi %10, %11 : i1
    %13 = arith.extui %12 : i1 to i32
    %c0_i32_6 = arith.constant 0 : i32
    %14 = arith.cmpi ne, %13, %c0_i32_6 : i32
    scf.if %14 {
      %15 = tpu.iota {dimensions = array<i32: 0>} : vector<2x1x1xi32>
      %16 = vector.broadcast %6 : i32 to vector<2x1x1xi32>
      %17 = arith.cmpi slt, %15, %16 : vector<2x1x1xi32>
      %c0 = arith.constant 0 : index
      %c0_7 = arith.constant 0 : index
      %c0_8 = arith.constant 0 : index
      %18 = vector.load %arg2[%c0, %c0_7, %c0_8] : memref<2x8x128xf32, #tpu.memory_space<vmem>>, vector<2x8x128xf32>
      %19 = arith.negf %18 : vector<2x8x128xf32>
      %20 = math.exp %19 : vector<2x8x128xf32>
      %cst = arith.constant 1.000000e+00 : f32
      %21 = vector.broadcast %cst : f32 to vector<2x8x128xf32>
      %22 = arith.addf %21, %20 : vector<2x8x128xf32>
      %23 = arith.divf %21, %22 : vector<2x8x128xf32>
      %cst_9 = arith.constant 0.000000e+00 : f32
      %24 = vector.shape_cast %17 : vector<2x1x1xi1> to vector<2x1x1xi1>
      %25 = vector.broadcast %24 : vector<2x1x1xi1> to vector<2x8x128xi1>
      %26 = vector.broadcast %cst_9 : f32 to vector<2x8x128xf32>
      %27 = arith.select %25, %23, %26 : vector<2x8x128xi1>, vector<2x8x128xf32>
      %c0_10 = arith.constant 0 : index
      %c0_11 = arith.constant 0 : index
      %c0_12 = arith.constant 0 : index
      %28 = vector.load %arg3[%c0_10, %c0_11, %c0_12] : memref<2x8x128xf32, #tpu.memory_space<vmem>>, vector<2x8x128xf32>
      %cst_13 = arith.constant 0.000000e+00 : f32
      %29 = vector.shape_cast %17 : vector<2x1x1xi1> to vector<2x1x1xi1>
      %30 = vector.broadcast %29 : vector<2x1x1xi1> to vector<2x8x128xi1>
      %31 = vector.broadcast %cst_13 : f32 to vector<2x8x128xf32>
      %32 = arith.select %30, %28, %31 : vector<2x8x128xi1>, vector<2x8x128xf32>
      %c0_14 = arith.constant 0 : index
      %c0_15 = arith.constant 0 : index
      %c0_16 = arith.constant 0 : index
      %33 = vector.load %arg4[%c0_14, %c0_15, %c0_16] : memref<1x8x128xf32, #tpu.memory_space<vmem>>, vector<1x8x128xf32>
      %34 = arith.mulf %27, %32 : vector<2x8x128xf32>
      %cst_17 = arith.constant dense<0.000000e+00> : vector<8x128xf32>
      %35 = vector.multi_reduction <add>, %34, %cst_17 [0] : vector<2x8x128xf32> to vector<8x128xf32>
      %36 = vector.shape_cast %35 : vector<8x128xf32> to vector<1x8x128xf32>
      %37 = arith.addf %33, %36 : vector<1x8x128xf32>
      %c0_18 = arith.constant 0 : index
      %c0_19 = arith.constant 0 : index
      %c0_20 = arith.constant 0 : index
      %38 = vector.load %arg4[%c0_18, %c0_19, %c0_20] : memref<1x8x128xf32, #tpu.memory_space<vmem>>, vector<1x8x128xf32>
      tpu.vector_store %arg4[%c0_18, %c0_19, %c0_20], %37 {strides = array<i32>} : memref<1x8x128xf32, #tpu.memory_space<vmem>>, vector<1x8x128xf32>,
      %c0_21 = arith.constant 0 : index
      %c0_22 = arith.constant 0 : index
      %c0_23 = arith.constant 0 : index
      %39 = vector.load %arg5[%c0_21, %c0_22, %c0_23] : memref<1x8x128xf32, #tpu.memory_space<vmem>>, vector<1x8x128xf32>
      %40 = arith.addf %27, %32 : vector<2x8x128xf32>
      %cst_24 = arith.constant dense<0.000000e+00> : vector<8x128xf32>
      %41 = vector.multi_reduction <add>, %40, %cst_24 [0] : vector<2x8x128xf32> to vector<8x128xf32>
      %42 = vector.shape_cast %41 : vector<8x128xf32> to vector<1x8x128xf32>
      %43 = arith.addf %39, %42 : vector<1x8x128xf32>
      %c0_25 = arith.constant 0 : index
      %c0_26 = arith.constant 0 : index
      %c0_27 = arith.constant 0 : index
      %44 = vector.load %arg5[%c0_25, %c0_26, %c0_27] : memref<1x8x128xf32, #tpu.memory_space<vmem>>, vector<1x8x128xf32>
      tpu.vector_store %arg5[%c0_25, %c0_26, %c0_27], %43 {strides = array<i32>} : memref<1x8x128xf32, #tpu.memory_space<vmem>>, vector<1x8x128xf32>,
    } else {
    }
    return
  }
  func.func @transform_0(%arg0: i32, %arg1: i32) -> (i32, i32, i32) {
    %c1_i32 = arith.constant 1 : i32
    %0 = arith.muli %arg0, %c1_i32 : i32
    %1 = arith.addi %0, %arg1 : i32
    %c0_i32 = arith.constant 0 : i32
    %2 = arith.minsi %1, %c0_i32 : i32
    %c0_i32_0 = arith.constant 0 : i32
    %c0_i32_1 = arith.constant 0 : i32
    %c0_i32_2 = arith.constant 0 : i32
    return %2, %c0_i32_0, %c0_i32_1 : i32, i32, i32
  }
  func.func @transform_1(%arg0: i32, %arg1: i32) -> (i32, i32, i32) {
    %c1_i32 = arith.constant 1 : i32
    %0 = arith.muli %arg0, %c1_i32 : i32
    %1 = arith.addi %0, %arg1 : i32
    %c0_i32 = arith.constant 0 : i32
    %2 = arith.minsi %1, %c0_i32 : i32
    %c0_i32_0 = arith.constant 0 : i32
    %c0_i32_1 = arith.constant 0 : i32
    %c0_i32_2 = arith.constant 0 : i32
    return %2, %c0_i32_0, %c0_i32_1 : i32, i32, i32
  }
  func.func @transform_2(%arg0: i32, %arg1: i32) -> (i32, i32, i32) {
    %c0_i32 = arith.constant 0 : i32
    %c0_i32_0 = arith.constant 0 : i32
    %c0_i32_1 = arith.constant 0 : i32
    return %arg0, %c0_i32, %c0_i32_0 : i32, i32, i32
  }
  func.func @transform_3(%arg0: i32, %arg1: i32) -> (i32, i32, i32) {
    %c0_i32 = arith.constant 0 : i32
    %c0_i32_0 = arith.constant 0 : i32
    %c0_i32_1 = arith.constant 0 : i32
    return %arg0, %c0_i32, %c0_i32_0 : i32, i32, i32
  }
}

</mosaic_0001>

<llo_original>
// kernel: tpu_custom_call.1
$region0: #{tpu_custom_call.1}
  #allocation0 [shape = 'u32[]', space=smem, size = 0x4, offset = 0x4, fixed_abs, tag = 'smem constant byte address 0x4 - core index']
  #allocation1 [shape = 'u32[72,128]{1,0:T(1,128)}', space=vmem, size = 0x9000, scoped, tag = 'internal scratch']
  %s0 = inlined_call_operand.hbm [shape: f32[2,8,128], index: 0, kind: input, shape index: {}]
  %s1 = inlined_call_operand.hbm [shape: f32[2,8,128], index: 1, kind: input, shape index: {}]
  %s2 = inlined_call_operand.hbm [shape: f32[1,8,128], index: 2, kind: output, shape index: {0}]
  %s3 = inlined_call_operand.hbm [shape: f32[1,8,128], index: 3, kind: output, shape index: {1}]
  %4 = xla_tuple %s2, %s3
  %s5 = sld [smem:[#allocation0]]
  $region46: #{tpu_custom_call.1} parent=0
    _
  %s7 = ssub.s32 1, %s5
  %s8 = scalar_select 0, %s7, %s5
  $region1: #{tpu_custom_call.1} parent=0
    #allocation2 [shape = 'u8[8192]{0}', space=vmem, size = 0x2000, scoped, tag = 'input window, operand 0, single buffered']
    #allocation3 [shape = 's32[1]{0}', space=sflag, size = 0x4, scoped, tag = 'scoped memory for tpu_custom_call.1']
    #allocation4 [shape = 's32[1]{0}', space=sflag, size = 0x4, scoped, tag = 'scoped memory for tpu_custom_call.1']
    #allocation5 [shape = 'u8[8192]{0}', space=vmem, size = 0x2000, scoped, tag = 'input window, operand 1, single buffered']
    #allocation6 [shape = 's32[1]{0}', space=sflag, size = 0x4, scoped, tag = 'scoped memory for tpu_custom_call.1']
    #allocation7 [shape = 'u8[4096]{0}', space=vmem, size = 0x1000, scoped, tag = 'output window, operand 0, single buffered']
    #allocation8 [shape = 'u8[4096]{0}', space=vmem, size = 0x1000, scoped, tag = 'output window, operand 1, single buffered']
    #allocation9 [shape = 's32[1]{0}', space=sflag, size = 0x4, scoped, tag = 'scoped memory for tpu_custom_call.1']
    %9 = vsyncpa [#allocation3], 0
    %10 = vsyncpa [#allocation6], 0
    %11 = vsyncpa [#allocation4], 0
    %12 = vsyncpa [#allocation9], 0
    // Predicated region
    $region2: #{tpu_custom_call.1} parent=1 // pred_check
      _
    $region3: #{tpu_custom_call.1} parent=1 // pred_check_branch
      %14 = sbr.rel (0) target = $region5
    $region4: #{tpu_custom_call.1} parent=1 // pred_region
      %s15 = sadd.s32 0, 0
      %p16 = scmp.lt.s32.totalorder %s15, 0
      %s17 = scalar_select %p16, %s15, 0
      %s18 = smul.u32 2, %s17
      %20 = vsyncadd [#allocation3], 0
      %s21 = smul.addr %s18, 8
      %s22 = scalar_lea.hbm %s0, %s21
      %s23 = sshll.u32 %s22, 4
      %s24 = int_to_ptr.hbm [resolvable:$true] %s23
      %s25 = sshll.u32 [#allocation2], 4
      %s26 = int_to_ptr.vmem [resolvable:$true] %s25
      %31 = dma.hbm_to_vmem [thread:$0]  %s24, 256, %s26, [#allocation3], 128, 128, 8
    $region5: #{tpu_custom_call.1} parent=1 // pred_fallthru
      _
    // Predicated region
    $region6: #{tpu_custom_call.1} parent=1 // pred_check
      _
    $region7: #{tpu_custom_call.1} parent=1 // pred_check_branch
      %33 = sbr.rel (0) target = $region9
    $region8: #{tpu_custom_call.1} parent=1 // pred_region
      %s34 = sadd.s32 0, 0
      %p35 = scmp.lt.s32.totalorder %s34, 0
      %s36 = scalar_select %p35, %s34, 0
      %s37 = smul.u32 2, %s36
      %39 = vsyncadd [#allocation6], 0
      %s40 = smul.addr %s37, 8
      %s41 = scalar_lea.hbm %s1, %s40
      %s42 = sshll.u32 %s41, 4
      %s43 = int_to_ptr.hbm [resolvable:$true] %s42
      %s44 = sshll.u32 [#allocation5], 4
      %s45 = int_to_ptr.vmem [resolvable:$true] %s44
      %50 = dma.hbm_to_vmem [thread:$0]  %s43, 256, %s45, [#allocation6], 128, 128, 8
    $region9: #{tpu_custom_call.1} parent=1 // pred_fallthru
      _
    // Predicated region
    $region10: #{tpu_custom_call.1} parent=1 // pred_check
      _
    $region11: #{tpu_custom_call.1} parent=1 // pred_check_branch
      %52 = sbr.rel (0) target = $region13
    $region12: #{tpu_custom_call.1} parent=1 // pred_region
      %54 = dma.done [#allocation3], 256
    $region13: #{tpu_custom_call.1} parent=1 // pred_fallthru
      _
    // Predicated region
    $region14: #{tpu_custom_call.1} parent=1 // pred_check
      _
    $region15: #{tpu_custom_call.1} parent=1 // pred_check_branch
      %56 = sbr.rel (0) target = $region17
    $region16: #{tpu_custom_call.1} parent=1 // pred_region
      %58 = dma.done [#allocation6], 256
    $region17: #{tpu_custom_call.1} parent=1 // pred_fallthru
      _
    %s59 = sadd.s32 0, 0
    %p60 = scmp.lt.s32.totalorder %s59, 0
    %s61 = scalar_select %p60, %s59, 0
    %s62 = smul.u32 2, %s61
    %s63 = sadd.s32 0, 0
    %p64 = scmp.lt.s32.totalorder %s63, 0
    %s65 = scalar_select %p64, %s63, 0
    %s66 = smul.u32 2, %s65
    %p67 = scmp.eq.s32.totalorder 0, 0
    // Predicated region
    $region18: #{tpu_custom_call.1} parent=1 // pred_check
      %p68 = pneg %p67
    $region19: #{tpu_custom_call.1} parent=1 // pred_check_branch
      %70 = sbr.rel (%p68) target = $region21
    $region20: #{tpu_custom_call.1} parent=1 // pred_region
      %71 = vst [vmem:[#allocation7] sm:$0xff] 0.0
      %72 = vst [vmem:[#allocation8] sm:$0xff] 0.0
    $region21: #{tpu_custom_call.1} parent=1 // pred_fallthru
      _
    %s73 = sadd.s32 0, 0
    %s74 = smul.u32 %s73, 2
    %s75 = ssub.s32 2, %s74
    %p76 = scmp.ge.s32.totalorder %s75, 2
    // Predicated region
    $region22: #{tpu_custom_call.1} parent=1 // pred_check
      %p77 = pneg %p76
    $region23: #{tpu_custom_call.1} parent=1 // pred_check_branch
      %79 = sbr.rel (%p77) target = $region25
    $region24: #{tpu_custom_call.1} parent=1 // pred_region
      %v80 = vld [vmem:[#allocation2] sm:$0xff]
      %v81 = vld [vmem:[#allocation2 + $0x8] sm:$0xff]
      %v82 = vxor.u32 %v80, 2147483648
      %v83 = vxor.u32 %v81, 2147483648
      %v84 = vmul.f32 %v82, 1.442695
      %v85 = vpow.pop %v84
      %v86 = vmul.f32 %v83, 1.442695
      %v87 = vpow.pop %v86
      %v88 = vadd.f32 %v85, 1.0
      %v89 = vadd.f32 %v87, 1.0
      %v90 = vrcp.pop %v88
      %v91 = vmul.f32 %v88, %v90
      %v92 = vsub.f32 1.0, %v91
      %v93 = vmul.f32 %v90, %v92
      %v94 = vadd.f32 %v90, %v93
      %vm95 = vweird.f32 %v88
      %vm96 = vweird.f32 %v90
      %vm97 = vmor %vm95, %vm96
      %v98 = vsel %vm97, %v90, %v94
      %v99 = vand.u32 2147483647, %v88
      %vm100 = vcmp.eq.f32.partialorder %v99, 8.507059e+37
      %v101 = vand.u32 %v88, 2147483648
      %v102 = vor.u32 1.1754944e-38, %v101
      %v103 = vsel %vm100, %v102, %v98
      %v104 = vmul.f32 1.0, %v103
      %v105 = vrcp.pop %v89
      %v106 = vmul.f32 %v89, %v105
      %v107 = vsub.f32 1.0, %v106
      %v108 = vmul.f32 %v105, %v107
      %v109 = vadd.f32 %v105, %v108
      %vm110 = vweird.f32 %v89
      %vm111 = vweird.f32 %v105
      %vm112 = vmor %vm110, %vm111
      %v113 = vsel %vm112, %v105, %v109
      %v114 = vand.u32 2147483647, %v89
      %vm115 = vcmp.eq.f32.partialorder %v114, 8.507059e+37
      %v116 = vand.u32 %v89, 2147483648
      %v117 = vor.u32 1.1754944e-38, %v116
      %v118 = vsel %vm115, %v117, %v113
      %v119 = vmul.f32 1.0, %v118
      %v120 = vld [vmem:[#allocation5] sm:$0xff]
      %v121 = vld [vmem:[#allocation5 + $0x8] sm:$0xff]
      %v122 = vld [vmem:[#allocation7] sm:$0xff]
      %v123 = vmul.f32 %v104, %v120
      %v124 = vmul.f32 %v119, %v121
      %v125 = vadd.f32 %v123, %v124
      %v126 = vadd.f32 %v122, %v125
      %127 = vst [vmem:[#allocation7] sm:$0xff] %v126
      %v128 = vld [vmem:[#allocation8] sm:$0xff]
      %v129 = vadd.f32 %v104, %v120
      %v130 = vadd.f32 %v119, %v121
      %v131 = vadd.f32 %v129, %v130
      %v132 = vadd.f32 %v128, %v131
      %133 = vst [vmem:[#allocation8] sm:$0xff] %v132
    $region25: #{tpu_custom_call.1} parent=1 // pred_fallthru
      _
    %p134 = scmp.gt.s32.totalorder %s75, 0
    %p135 = scmp.lt.s32.totalorder %s75, 2
    %p136 = pnand %p134, %p135
    %p137 = pneg %p136
    // Predicated region
    $region26: #{tpu_custom_call.1} parent=1 // pred_check
      _
    $region27: #{tpu_custom_call.1} parent=1 // pred_check_branch
      %139 = sbr.rel (%p136) target = $region29
    $region28: #{tpu_custom_call.1} parent=1 // pred_region
      %v140 = vstv %s75
      %vm141 = vcmp.gt.s32.totalorder %v140, 0
      %vm142 = vcmp.gt.s32.totalorder %v140, 1
      %v143 = vld [vmem:[#allocation2] sm:$0xff]
      %v144 = vld [vmem:[#allocation2 + $0x8] sm:$0xff]
      %v145 = vxor.u32 %v143, 2147483648
      %v146 = vxor.u32 %v144, 2147483648
      %v147 = vmul.f32 %v145, 1.442695
      %v148 = vpow.pop %v147
      %v149 = vmul.f32 %v146, 1.442695
      %v150 = vpow.pop %v149
      %v151 = vadd.f32 %v148, 1.0
      %v152 = vadd.f32 %v150, 1.0
      %v153 = vrcp.pop %v151
      %v154 = vmul.f32 %v151, %v153
      %v155 = vsub.f32 1.0, %v154
      %v156 = vmul.f32 %v153, %v155
      %v157 = vadd.f32 %v153, %v156
      %vm158 = vweird.f32 %v151
      %vm159 = vweird.f32 %v153
      %vm160 = vmor %vm158, %vm159
      %v161 = vsel %vm160, %v153, %v157
      %v162 = vand.u32 2147483647, %v151
      %vm163 = vcmp.eq.f32.partialorder %v162, 8.507059e+37
      %v164 = vand.u32 %v151, 2147483648
      %v165 = vor.u32 1.1754944e-38, %v164
      %v166 = vsel %vm163, %v165, %v161
      %v167 = vmul.f32 1.0, %v166
      %v168 = vrcp.pop %v152
      %v169 = vmul.f32 %v152, %v168
      %v170 = vsub.f32 1.0, %v169
      %v171 = vmul.f32 %v168, %v170
      %v172 = vadd.f32 %v168, %v171
      %vm173 = vweird.f32 %v152
      %vm174 = vweird.f32 %v168
      %vm175 = vmor %vm173, %vm174
      %v176 = vsel %vm175, %v168, %v172
      %v177 = vand.u32 2147483647, %v152
      %vm178 = vcmp.eq.f32.partialorder %v177, 8.507059e+37
      %v179 = vand.u32 %v152, 2147483648
      %v180 = vor.u32 1.1754944e-38, %v179
      %v181 = vsel %vm178, %v180, %v176
      %v182 = vmul.f32 1.0, %v181
      %v183 = vsel %vm141, 1, 0
      %v184 = vsel %vm142, 1, 0
      %vm185 = vcmp.eq.s32.totalorder %v183, 1
      %vm186 = vcmp.eq.s32.totalorder %v184, 1
      %v187 = vsel %vm185, %v167, 0.0
      %v188 = vsel %vm186, %v182, 0.0
      %v189 = vld [vmem:[#allocation5] sm:$0xff]
      %v190 = vld [vmem:[#allocation5 + $0x8] sm:$0xff]
      %v191 = vsel %vm185, %v189, 0.0
      %v192 = vsel %vm186, %v190, 0.0
      %v193 = vld [vmem:[#allocation7] sm:$0xff]
      %v194 = vmul.f32 %v187, %v191
      %v195 = vmul.f32 %v188, %v192
      %v196 = vadd.f32 %v194, %v195
      %v197 = vadd.f32 %v193, %v196
      %198 = vst [vmem:[#allocation7] sm:$0xff] %v197
      %v199 = vld [vmem:[#allocation8] sm:$0xff]
      %v200 = vadd.f32 %v187, %v191
      %v201 = vadd.f32 %v188, %v192
      %v202 = vadd.f32 %v200, %v201
      %v203 = vadd.f32 %v199, %v202
      %204 = vst [vmem:[#allocation8] sm:$0xff] %v203
    $region29: #{tpu_custom_call.1} parent=1 // pred_fallthru
      _
    // Predicated region
    $region30: #{tpu_custom_call.1} parent=1 // pred_check
      _
    $region31: #{tpu_custom_call.1} parent=1 // pred_check_branch
      %206 = sbr.rel (0) target = $region33
    $region32: #{tpu_custom_call.1} parent=1 // pred_region
      %208 = vsyncadd [#allocation4], 0
      %s210 = sshll.u32 [#allocation7], 4
      %s211 = int_to_ptr.vmem [resolvable:$true] %s210
      %s212 = sshll.u32 %s2, 4
      %s213 = int_to_ptr.hbm [resolvable:$true] %s212
      %215 = dma.vmem_to_hbm [thread:$0]  %s211, 128, %s213, [#allocation4]
    $region33: #{tpu_custom_call.1} parent=1 // pred_fallthru
      _
    // Predicated region
    $region34: #{tpu_custom_call.1} parent=1 // pred_check
      _
    $region35: #{tpu_custom_call.1} parent=1 // pred_check_branch
      %217 = sbr.rel (0) target = $region37
    $region36: #{tpu_custom_call.1} parent=1 // pred_region
      %219 = vsyncadd [#allocation9], 0
      %s221 = sshll.u32 [#allocation8], 4
      %s222 = int_to_ptr.vmem [resolvable:$true] %s221
      %s223 = sshll.u32 %s3, 4
      %s224 = int_to_ptr.hbm [resolvable:$true] %s223
      %226 = dma.vmem_to_hbm [thread:$0]  %s222, 128, %s224, [#allocation9]
    $region37: #{tpu_custom_call.1} parent=1 // pred_fallthru
      _
    // Predicated region
    $region38: #{tpu_custom_call.1} parent=1 // pred_check
      _
    $region39: #{tpu_custom_call.1} parent=1 // pred_check_branch
      %228 = sbr.rel (0) target = $region41
    $region40: #{tpu_custom_call.1} parent=1 // pred_region
      %230 = dma.done [#allocation4], 128
    $region41: #{tpu_custom_call.1} parent=1 // pred_fallthru
      _
    // Predicated region
    $region42: #{tpu_custom_call.1} parent=1 // pred_check
      _
    $region43: #{tpu_custom_call.1} parent=1 // pred_check_branch
      %232 = sbr.rel (0) target = $region45
    $region44: #{tpu_custom_call.1} parent=1 // pred_region
      %234 = dma.done [#allocation9], 128
    $region45: #{tpu_custom_call.1} parent=1 // pred_fallthru
      _
    %235 = vsyncpa [#allocation3], 1
    %236 = vsyncpa [#allocation6], 1
    %237 = vsyncpa [#allocation4], 1
    %238 = vsyncpa [#allocation9], 1

</llo_original>
